<compile_context>
chip_gen: v7x
topology: tpu7x:2x2x1
jax: 0.10.0
libtpu: 0.0.40
codegen_flags: <defaults>
</compile_context>

<pallas_src>
import functools

import numpy as np
import jax
import jax.numpy as jnp
from jax.experimental import pallas as pl
from jax.experimental.pallas import tpu as pltpu


def bottleneck_kernel(x_ref, w1_ref, b1_ref, w2_ref, b2_ref, w3_ref, b3_ref,
                      out_ref, *, H):
    x = x_ref[...]                                   # (nb*H, W*Cin) f32, lane dense
    nh = x.shape[0]
    bf16 = jnp.bfloat16

    # ---- conv1 (1x1, BN scale pre-folded): bf16 MXU, f32 accum, bias+relu ----
    y1 = jnp.dot(x.astype(bf16), w1_ref[...], preferred_element_type=jnp.float32)
    y1 = jnp.maximum(y1 + b1_ref[...], 0.0)          # (nh, W*width) f32

    # ---- conv2 (3x3, pad=1) as THREE accumulated dots (no lane-axis concat) --
    # Vertical taps: sublane roll (XLU) + (nh,1) row-validity mask (also kills
    # wrap across images inside a block). Horizontal taps + zero padding are
    # folded into the block-tridiagonal weight taps w2_ref[0..2].
    rows = jax.lax.broadcasted_iota(jnp.int32, (nh, 1), 0) % H
    down = jnp.where(rows > 0, pltpu.roll(y1, shift=1, axis=0), 0.0)          # row h-1
    up = jnp.where(rows < H - 1, pltpu.roll(y1, shift=nh - 1, axis=0), 0.0)   # row h+1
    y2 = jnp.dot(down.astype(bf16), w2_ref[0], preferred_element_type=jnp.float32)
    y2 = y2 + jnp.dot(y1.astype(bf16), w2_ref[1], preferred_element_type=jnp.float32)
    y2 = y2 + jnp.dot(up.astype(bf16), w2_ref[2], preferred_element_type=jnp.float32)
    y2 = jnp.maximum(y2 + b2_ref[...], 0.0)          # (nh, W*width) f32

    # ---- conv3 (1x1) + bias + residual + relu: 128-lane dense f32 store -----
    y3 = jnp.dot(y2.astype(bf16), w3_ref[...], preferred_element_type=jnp.float32)
    out_ref[...] = jnp.maximum(y3 + b3_ref[...] + x, 0.0).astype(out_ref.dtype)


def bottleneck_forward(x_nchw, w1, s1, b1, w2_hwio, s2, b2, w3, s3, b3,
                       *, images_per_step=1):
    N, Cin, H, W = x_nchw.shape
    width = w1.shape[1]
    Cout = w3.shape[1]
    assert Cin == Cout, "downsample=None requires inplanes == planes*expansion"
    assert N % images_per_step == 0, "grid blocks must contain whole images"
    nb = images_per_step
    f32, bf16 = jnp.float32, jnp.bfloat16

    # -------- host-side weight prep (BN folded, structured bf16 layouts) -----
    w1f = (w1 * s1).astype(f32)                                   # (Cin, width)
    w2f = (w2_hwio * s2.reshape(1, 1, 1, width)).astype(f32)      # (3,3,width,width)
    w3f = (w3 * s3).astype(f32)                                   # (width, Cout)

    eyeW = jnp.eye(W, dtype=f32)
    # block-diagonal 1x1 weights: rows = (w_in, cin), cols = (w_out, cout)
    w1_big = jnp.einsum('io,cd->icod', eyeW, w1f).reshape(W * Cin, W * width).astype(bf16)
    w3_big = jnp.einsum('io,cd->icod', eyeW, w3f).reshape(W * width, W * Cout).astype(bf16)

    # block-tridiagonal 3x3 weight, one (W*width, W*width) block per ky tap:
    # rows = (w_in, cin), cols = (w_out, cout)
    wi = np.arange(W)[:, None, None]
    wo = np.arange(W)[None, :, None]
    kx = np.arange(3)[None, None, :]
    T = jnp.asarray((wi - wo + 1 == kx).astype(np.float32))       # (W, W, 3)
    w2_big = (jnp.einsum('iok,ykcd->yicod', T, w2f)
              .reshape(3, W * width, W * width).astype(bf16))

    b1_big = jnp.tile(b1.reshape(1, width), (1, W)).astype(f32)   # (1, W*width)
    b2_big = jnp.tile(b2.reshape(1, width), (1, W)).astype(f32)   # (1, W*width)
    b3_big = jnp.tile(b3.reshape(1, Cout), (1, W)).astype(f32)    # (1, W*Cout)

    # activations: NCHW -> rows=(n,h), lanes=(w,c);  W*Cin = 128 -> lane dense
    x_d = jnp.transpose(x_nchw, (0, 2, 3, 1)).reshape(N * H, W * Cin)

    # Batch-parallel grid: whole-image blocks (nb*H rows), >1 step so the
    # x/out DMAs pipeline and v7x can shard the steps across its 2 TCs.
    grid = (N // nb,)

    const = dict(pipeline_mode=pl.Buffered(1))   # constant blocks: single-buffer

    out_d = pl.pallas_call(
        functools.partial(bottleneck_kernel, H=H),
        out_shape=jax.ShapeDtypeStruct((N * H, W * Cout), jnp.float32),
        grid_spec=pltpu.PrefetchScalarGridSpec(
            num_scalar_prefetch=0,
            grid=grid,
            in_specs=[
                pl.BlockSpec((nb * H, W * Cin), lambda i: (i, 0)),
                pl.BlockSpec((W * Cin, W * width), lambda i: (0, 0), **const),
                pl.BlockSpec((1, W * width), lambda i: (0, 0), **const),
                pl.BlockSpec((3, W * width, W * width), lambda i: (0, 0, 0), **const),
                pl.BlockSpec((1, W * width), lambda i: (0, 0), **const),
                pl.BlockSpec((W * width, W * Cout), lambda i: (0, 0), **const),
                pl.BlockSpec((1, W * Cout), lambda i: (0, 0), **const),
            ],
            out_specs=pl.BlockSpec((nb * H, W * Cout), lambda i: (i, 0)),
        ),
        compiler_params=pltpu.CompilerParams(
            dimension_semantics=("parallel",)),
    )(x_d, w1_big, b1_big, w2_big, b2_big, w3_big, b3_big)

    return jnp.transpose(out_d.reshape(N, H, W, Cout), (0, 3, 1, 2))   # -> NCHW


# ---------------------------- pure-JAX reference -----------------------------
def bottleneck_ref(x_nchw, w1, s1, b1, w2_hwio, s2, b2, w3, s3, b3):
    x = jnp.transpose(x_nchw, (0, 2, 3, 1)).astype(jnp.float32)   # NHWC
    y = jnp.einsum('nhwc,cd->nhwd', x, w1) * s1 + b1
    y = jnp.maximum(y, 0.0)
    y = jax.lax.conv_general_dilated(
        y, w2_hwio, window_strides=(1, 1), padding=((1, 1), (1, 1)),
        dimension_numbers=('NHWC', 'HWIO', 'NHWC'))
    y = y * s2 + b2
    y = jnp.maximum(y, 0.0)
    y = jnp.einsum('nhwc,cd->nhwd', y, w3) * s3 + b3
    y = jnp.maximum(y + x, 0.0)
    return jnp.transpose(y, (0, 3, 1, 2))


def fold_bn(gamma, beta, mean, var, eps=1e-5):
    scale = gamma / jnp.sqrt(var + eps)
    bias = beta - mean * scale
    return (scale.reshape(1, -1).astype(jnp.float32),
            bias.reshape(1, -1).astype(jnp.float32))


if __name__ == "__main__":
    # Bottleneck(inplanes=16, planes=4): width = 4, out channels = 16
    inplanes, planes = 16, 4
    expansion = 4
    width = planes            # base_width=64, groups=1
    cout = planes * expansion
    N, H, W = 2, 8, 8

    key = jax.random.PRNGKey(0)
    keys = jax.random.split(key, 8)

    x = jax.random.normal(keys[0], (N, inplanes, H, W), jnp.float32)

    # conv weights (matmul-friendly layouts; 3x3 kept as HWIO)
    w1 = jax.random.normal(keys[1], (inplanes, width), jnp.float32) * 0.1   # 1x1: (Cin, width)
    w2_hwio = jax.random.normal(keys[2], (3, 3, width, width), jnp.float32) * 0.1
    w3 = jax.random.normal(keys[3], (width, cout), jnp.float32) * 0.1       # 1x1: (width, Cout)

    # BatchNorm params (eval mode), folded into per-channel scale/bias
    def bn_params(k, c):
        k1, k2, k3, k4 = jax.random.split(k, 4)
        gamma = jax.random.uniform(k1, (c,), jnp.float32, 0.5, 1.5)
        beta = jax.random.normal(k2, (c,), jnp.float32) * 0.1
        mean = jax.random.normal(k3, (c,), jnp.float32) * 0.1
        var = jax.random.uniform(k4, (c,), jnp.float32, 0.5, 1.5)
        return fold_bn(gamma, beta, mean, var)

    s1, b1 = bn_params(keys[4], width)
    s2, b2 = bn_params(keys[5], width)
    s3, b3 = bn_params(keys[6], cout)

    out = bottleneck_forward(x, w1, s1, b1, w2_hwio, s2, b2, w3, s3, b3)
    out = jax.block_until_ready(out)

    ref = bottleneck_ref(x, w1, s1, b1, w2_hwio, s2, b2, w3, s3, b3)
    assert out.shape == (N, inplanes, H, W)
    # Tolerance reflects bf16 MXU operands (f32 accumulation / f32 epilogue);
    # any structural error (wrong tap / mask / layout) would be O(1) off.
    assert jnp.allclose(out, ref, rtol=5e-2, atol=1e-1), "mismatch vs reference"

    print("KERNEL_OK")
</pallas_src>

<mosaic_0001>
module attributes {stable_mosaic.version = 11 : i64} {
  func.func @bottleneck_kernel(%arg0: i32, %arg1: memref<8x128xf32, #tpu.memory_space<vmem>>, %arg2: memref<128x32xbf16, #tpu.memory_space<vmem>>, %arg3: memref<1x32xf32, #tpu.memory_space<vmem>>, %arg4: memref<3x32x32xbf16, #tpu.memory_space<vmem>>, %arg5: memref<1x32xf32, #tpu.memory_space<vmem>>, %arg6: memref<32x128xbf16, #tpu.memory_space<vmem>>, %arg7: memref<1x128xf32, #tpu.memory_space<vmem>>, %arg8: memref<8x128xf32, #tpu.memory_space<vmem>>) attributes {dimension_semantics = [#tpu.dimension_semantics<parallel>], iteration_bounds = array<i64: 2>, scalar_prefetch = 0 : i64, scratch_operands = 0 : i64, tpu.core_type = #tpu.core_type<tc>, window_params = [{transform_indices = @transform_0, window_bounds = array<i64: 8, 128>}, {pipeline_mode = #tpu.pipeline_mode<synchronous>, transform_indices = @transform_1, window_bounds = array<i64: 128, 32>}, {pipeline_mode = #tpu.pipeline_mode<synchronous>, transform_indices = @transform_2, window_bounds = array<i64: 1, 32>}, {pipeline_mode = #tpu.pipeline_mode<synchronous>, transform_indices = @transform_3, window_bounds = array<i64: 3, 32, 32>}, {pipeline_mode = #tpu.pipeline_mode<synchronous>, transform_indices = @transform_4, window_bounds = array<i64: 1, 32>}, {pipeline_mode = #tpu.pipeline_mode<synchronous>, transform_indices = @transform_5, window_bounds = array<i64: 32, 128>}, {pipeline_mode = #tpu.pipeline_mode<synchronous>, transform_indices = @transform_6, window_bounds = array<i64: 1, 128>}, {transform_indices = @transform_7, window_bounds = array<i64: 8, 128>}]} {
    %c0 = arith.constant 0 : index
    %c0_0 = arith.constant 0 : index
    %0 = vector.load %arg1[%c0, %c0_0] : memref<8x128xf32, #tpu.memory_space<vmem>>, vector<8x128xf32>
    %1 = arith.truncf %0 : vector<8x128xf32> to vector<8x128xbf16>
    %c0_1 = arith.constant 0 : index
    %c0_2 = arith.constant 0 : index
    %2 = vector.load %arg2[%c0_1, %c0_2] : memref<128x32xbf16, #tpu.memory_space<vmem>>, vector<128x32xbf16>
    %cst = arith.constant dense<0.000000e+00> : vector<8x32xf32>
    %3 = tpu.matmul %1, %2, %cst {dimension_numbers = #tpu.dot_dimension_numbers<[1], [0], [0], [1], [0, 0, 1, 1], [], []>} : vector<8x128xbf16>, vector<128x32xbf16>, vector<8x32xf32> -> vector<8x32xf32>
    %c0_3 = arith.constant 0 : index
    %c0_4 = arith.constant 0 : index
    %4 = vector.load %arg3[%c0_3, %c0_4] : memref<1x32xf32, #tpu.memory_space<vmem>>, vector<1x32xf32>
    %5 = vector.broadcast %4 : vector<1x32xf32> to vector<8x32xf32>
    %6 = arith.addf %3, %5 : vector<8x32xf32>
    %cst_5 = arith.constant 0.000000e+00 : f32
    %7 = vector.broadcast %cst_5 : f32 to vector<8x32xf32>
    %8 = arith.maximumf %6, %7 : vector<8x32xf32>
    %9 = tpu.iota {dimensions = array<i32: 0>} : vector<8x1xi32>
    %c8_i32 = arith.constant 8 : i32
    %c0_i32 = arith.constant 0 : i32
    %10 = arith.cmpi eq, %c8_i32, %c0_i32 : i32
    %c1_i32 = arith.constant 1 : i32
    %11 = arith.select %10, %c1_i32, %c8_i32 : i32
    %12 = vector.broadcast %11 : i32 to vector<8x1xi32>
    %13 = arith.remsi %9, %12 : vector<8x1xi32>
    %c0_i32_6 = arith.constant 0 : i32
    %14 = vector.broadcast %c0_i32_6 : i32 to vector<8x1xi32>
    %15 = arith.cmpi ne, %13, %14 : vector<8x1xi32>
    %c0_i32_7 = arith.constant 0 : i32
    %16 = vector.broadcast %c0_i32_7 : i32 to vector<8x1xi32>
    %17 = arith.cmpi slt, %13, %16 : vector<8x1xi32>
    %c0_i32_8 = arith.constant 0 : i32
    %18 = arith.cmpi slt, %11, %c0_i32_8 : i32
    %19 = vector.broadcast %18 : i1 to vector<8x1xi1>
    %20 = vector.broadcast %19 : vector<8x1xi1> to vector<8x1xi1>
    %21 = arith.xori %17, %20 : vector<8x1xi1>
    %22 = arith.andi %21, %15 : vector<8x1xi1>
    %23 = vector.broadcast %11 : i32 to vector<8x1xi32>
    %24 = arith.addi %13, %23 : vector<8x1xi32>
    %25 = arith.select %22, %24, %13 : vector<8x1xi1>, vector<8x1xi32>
    %c0_i32_9 = arith.constant 0 : i32
    %26 = vector.broadcast %c0_i32_9 : i32 to vector<8x1xi32>
    %27 = arith.cmpi sgt, %25, %26 : vector<8x1xi32>
    %c1_i32_10 = arith.constant 1 : i32
    %28 = tpu.dynamic_rotate %8 by %c1_i32_10 dim 0 : vector<8x32xf32>, i32 -> vector<8x32xf32>
    %cst_11 = arith.constant 0.000000e+00 : f32
    %29 = vector.shape_cast %27 : vector<8x1xi1> to vector<8x1xi1>
    %30 = vector.broadcast %29 : vector<8x1xi1> to vector<8x32xi1>
    %31 = vector.broadcast %cst_11 : f32 to vector<8x32xf32>
    %32 = arith.select %30, %28, %31 : vector<8x32xi1>, vector<8x32xf32>
    %c7_i32 = arith.constant 7 : i32
    %33 = vector.broadcast %c7_i32 : i32 to vector<8x1xi32>
    %34 = arith.cmpi slt, %25, %33 : vector<8x1xi32>
    %c7_i32_12 = arith.constant 7 : i32
    %35 = tpu.dynamic_rotate %8 by %c7_i32_12 dim 0 : vector<8x32xf32>, i32 -> vector<8x32xf32>
    %cst_13 = arith.constant 0.000000e+00 : f32
    %36 = vector.shape_cast %34 : vector<8x1xi1> to vector<8x1xi1>
    %37 = vector.broadcast %36 : vector<8x1xi1> to vector<8x32xi1>
    %38 = vector.broadcast %cst_13 : f32 to vector<8x32xf32>
    %39 = arith.select %37, %35, %38 : vector<8x32xi1>, vector<8x32xf32>
    %40 = arith.truncf %32 : vector<8x32xf32> to vector<8x32xbf16>
    %c0_14 = arith.constant 0 : index
    %c0_15 = arith.constant 0 : index
    %c0_16 = arith.constant 0 : index
    %41 = vector.load %arg4[%c0_14, %c0_15, %c0_16] : memref<3x32x32xbf16, #tpu.memory_space<vmem>>, vector<1x32x32xbf16>
    %42 = vector.shape_cast %41 : vector<1x32x32xbf16> to vector<32x32xbf16>
    %cst_17 = arith.constant dense<0.000000e+00> : vector<8x32xf32>
    %43 = tpu.matmul %40, %42, %cst_17 {dimension_numbers = #tpu.dot_dimension_numbers<[1], [0], [0], [1], [0, 0, 1, 1], [], []>} : vector<8x32xbf16>, vector<32x32xbf16>, vector<8x32xf32> -> vector<8x32xf32>
    %44 = arith.truncf %8 : vector<8x32xf32> to vector<8x32xbf16>
    %c1 = arith.constant 1 : index
    %c0_18 = arith.constant 0 : index
    %c0_19 = arith.constant 0 : index
    %45 = vector.load %arg4[%c1, %c0_18, %c0_19] : memref<3x32x32xbf16, #tpu.memory_space<vmem>>, vector<1x32x32xbf16>
    %46 = vector.shape_cast %45 : vector<1x32x32xbf16> to vector<32x32xbf16>
    %cst_20 = arith.constant dense<0.000000e+00> : vector<8x32xf32>
    %47 = tpu.matmul %44, %46, %cst_20 {dimension_numbers = #tpu.dot_dimension_numbers<[1], [0], [0], [1], [0, 0, 1, 1], [], []>} : vector<8x32xbf16>, vector<32x32xbf16>, vector<8x32xf32> -> vector<8x32xf32>
    %48 = arith.addf %43, %47 : vector<8x32xf32>
    %49 = arith.truncf %39 : vector<8x32xf32> to vector<8x32xbf16>
    %c2 = arith.constant 2 : index
    %c0_21 = arith.constant 0 : index
    %c0_22 = arith.constant 0 : index
    %50 = vector.load %arg4[%c2, %c0_21, %c0_22] : memref<3x32x32xbf16, #tpu.memory_space<vmem>>, vector<1x32x32xbf16>
    %51 = vector.shape_cast %50 : vector<1x32x32xbf16> to vector<32x32xbf16>
    %cst_23 = arith.constant dense<0.000000e+00> : vector<8x32xf32>
    %52 = tpu.matmul %49, %51, %cst_23 {dimension_numbers = #tpu.dot_dimension_numbers<[1], [0], [0], [1], [0, 0, 1, 1], [], []>} : vector<8x32xbf16>, vector<32x32xbf16>, vector<8x32xf32> -> vector<8x32xf32>
    %53 = arith.addf %48, %52 : vector<8x32xf32>
    %c0_24 = arith.constant 0 : index
    %c0_25 = arith.constant 0 : index
    %54 = vector.load %arg5[%c0_24, %c0_25] : memref<1x32xf32, #tpu.memory_space<vmem>>, vector<1x32xf32>
    %55 = vector.broadcast %54 : vector<1x32xf32> to vector<8x32xf32>
    %56 = arith.addf %53, %55 : vector<8x32xf32>
    %cst_26 = arith.constant 0.000000e+00 : f32
    %57 = vector.broadcast %cst_26 : f32 to vector<8x32xf32>
    %58 = arith.maximumf %56, %57 : vector<8x32xf32>
    %59 = arith.truncf %58 : vector<8x32xf32> to vector<8x32xbf16>
    %c0_27 = arith.constant 0 : index
    %c0_28 = arith.constant 0 : index
    %60 = vector.load %arg6[%c0_27, %c0_28] : memref<32x128xbf16, #tpu.memory_space<vmem>>, vector<32x128xbf16>
    %cst_29 = arith.constant dense<0.000000e+00> : vector<8x128xf32>
    %61 = tpu.matmul %59, %60, %cst_29 {dimension_numbers = #tpu.dot_dimension_numbers<[1], [0], [0], [1], [0, 0, 1, 1], [], []>} : vector<8x32xbf16>, vector<32x128xbf16>, vector<8x128xf32> -> vector<8x128xf32>
    %c0_30 = arith.constant 0 : index
    %c0_31 = arith.constant 0 : index
    %62 = vector.load %arg7[%c0_30, %c0_31] : memref<1x128xf32, #tpu.memory_space<vmem>>, vector<1x128xf32>
    %63 = vector.broadcast %62 : vector<1x128xf32> to vector<8x128xf32>
    %64 = arith.addf %61, %63 : vector<8x128xf32>
    %65 = arith.addf %64, %0 : vector<8x128xf32>
    %cst_32 = arith.constant 0.000000e+00 : f32
    %66 = vector.broadcast %cst_32 : f32 to vector<8x128xf32>
    %67 = arith.maximumf %65, %66 : vector<8x128xf32>
    %c0_33 = arith.constant 0 : index
    %c0_34 = arith.constant 0 : index
    %68 = vector.load %arg8[%c0_33, %c0_34] : memref<8x128xf32, #tpu.memory_space<vmem>>, vector<8x128xf32>
    tpu.vector_store %arg8[%c0_33, %c0_34], %67 {strides = array<i32>} : memref<8x128xf32, #tpu.memory_space<vmem>>, vector<8x128xf32>,
    return
  }
  func.func @transform_0(%arg0: i32) -> (i32, i32) {
    %c0_i32 = arith.constant 0 : i32
    %c0_i32_0 = arith.constant 0 : i32
    return %arg0, %c0_i32 : i32, i32
  }
  func.func @transform_1(%arg0: i32) -> (i32, i32) {
    %c0_i32 = arith.constant 0 : i32
    %c0_i32_0 = arith.constant 0 : i32
    %c0_i32_1 = arith.constant 0 : i32
    return %c0_i32, %c0_i32_0 : i32, i32
  }
  func.func @transform_2(%arg0: i32) -> (i32, i32) {
    %c0_i32 = arith.constant 0 : i32
    %c0_i32_0 = arith.constant 0 : i32
    %c0_i32_1 = arith.constant 0 : i32
    return %c0_i32, %c0_i32_0 : i32, i32
  }
  func.func @transform_3(%arg0: i32) -> (i32, i32, i32) {
    %c0_i32 = arith.constant 0 : i32
    %c0_i32_0 = arith.constant 0 : i32
    %c0_i32_1 = arith.constant 0 : i32
    %c0_i32_2 = arith.constant 0 : i32
    return %c0_i32, %c0_i32_0, %c0_i32_1 : i32, i32, i32
  }
  func.func @transform_4(%arg0: i32) -> (i32, i32) {
    %c0_i32 = arith.constant 0 : i32
    %c0_i32_0 = arith.constant 0 : i32
    %c0_i32_1 = arith.constant 0 : i32
    return %c0_i32, %c0_i32_0 : i32, i32
  }
  func.func @transform_5(%arg0: i32) -> (i32, i32) {
    %c0_i32 = arith.constant 0 : i32
    %c0_i32_0 = arith.constant 0 : i32
    %c0_i32_1 = arith.constant 0 : i32
    return %c0_i32, %c0_i32_0 : i32, i32
  }
  func.func @transform_6(%arg0: i32) -> (i32, i32) {
    %c0_i32 = arith.constant 0 : i32
    %c0_i32_0 = arith.constant 0 : i32
    %c0_i32_1 = arith.constant 0 : i32
    return %c0_i32, %c0_i32_0 : i32, i32
  }
  func.func @transform_7(%arg0: i32) -> (i32, i32) {
    %c0_i32 = arith.constant 0 : i32
    %c0_i32_0 = arith.constant 0 : i32
    return %arg0, %c0_i32 : i32, i32
  }
}

</mosaic_0001>

<llo_original>
// kernel: tpu_custom_call.1
$region0: #{tpu_custom_call.1}
  #allocation0 [shape = 'u32[]', space=smem, size = 0x4, offset = 0x4, fixed_abs, tag = 'smem constant byte address 0x4 - core index']
  #allocation1 [shape = 'u32[144,128]{1,0:T(1,128)}', space=vmem, size = 0x12000, scoped, tag = 'internal scratch']
  %s0 = inlined_call_operand.vmem [shape: f32[16,128], index: 0, kind: input, shape index: {}]
  %s1 = inlined_call_operand.vmem [shape: bf16[128,32], index: 1, kind: input, shape index: {}]
  %s2 = inlined_call_operand.vmem [shape: f32[1,32], index: 2, kind: input, shape index: {}]
  %s3 = inlined_call_operand.vmem [shape: bf16[3,32,32], index: 3, kind: input, shape index: {}]
  %s4 = inlined_call_operand.vmem [shape: f32[1,32], index: 4, kind: input, shape index: {}]
  %s5 = inlined_call_operand.vmem [shape: bf16[32,128], index: 5, kind: input, shape index: {}]
  %s6 = inlined_call_operand.vmem [shape: f32[1,128], index: 6, kind: input, shape index: {}]
  %s7 = inlined_call_operand.hbm [shape: f32[16,128], index: 7, kind: output, shape index: {}]
  %s8 = sld [smem:[#allocation0]]
  $region61: #{tpu_custom_call.1} parent=0
    _
  %s10 = ssub.s32 1, %s8
  %s11 = scalar_select 0, %s10, %s8
  $region1: #{tpu_custom_call.1} parent=0
    #allocation2 [shape = 'u8[8192]{0}', space=vmem, size = 0x2000, scoped, tag = 'output window, operand 0']
    #allocation3 [shape = 's32[2]{0}', space=sflag, size = 0x8, scoped, tag = 'scoped memory for tpu_custom_call.1']
    %12 = vsyncpa [#allocation3], 0
    %s13 = scalar_lea.sflag [#allocation3], 1
    %14 = vsyncpa %s13, 0
    loop: start=0, step=1, limit=4
    $region2: #{tpu_custom_call.1} parent=1 // loop_pre_header
      _
    $region3: #{tpu_custom_call.1} parent=1 // loop_header
      %s16 = sphi 0, %s20
      %p17 = scmp.ge.s32.totalorder %s16, 4
      %s26 = sphi 0, %s28
      %s29 = sphi 0, %s26
      %s30 = sphi 0, %s29
      %s46 = sphi 0, %s30
      %s50 = sphi 0, %s50
      %s52 = sphi 0, %s50
      %s53 = sphi 0, %s52
      %s67 = sphi 0, %s53
      %s71 = sphi 0, %s71
      %s73 = sphi 0, %s71
      %s74 = sphi 0, %s73
      %s88 = sphi 0, %s74
      %s92 = sphi 0, %s92
      %s94 = sphi 0, %s92
      %s95 = sphi 0, %s94
      %s109 = sphi 0, %s95
      %s113 = sphi 0, %s113
      %s115 = sphi 0, %s113
      %s116 = sphi 0, %s115
      %s130 = sphi 0, %s116
      %s134 = sphi 0, %s134
      %s136 = sphi 0, %s134
      %s137 = sphi 0, %s136
      %s151 = sphi 0, %s137
      %s155 = sphi 0, %s155
      %s157 = sphi 0, %s155
      %s158 = sphi 0, %s157
      %s172 = sphi 0, %s158
      %s178 = sphi 0, %s180
      %s181 = sphi 0, %s178
      %s182 = sphi 0, %s181
      %s198 = sphi 0, %s182
    $region4: #{tpu_custom_call.1} parent=1 // loop_header_branch
      %19 = sbr.rel (%p17) target = $region8
    $region5: #{tpu_custom_call.1} parent=1 // loop_body
      %s21 = ssub.s32 %s16, 1
      %s22 = ssub.s32 %s16, 2
      %s23 = sadd.s32 %s16, 1
      %s24 = ssub.s32 %s16, %s23
      %p25 = scmp.eq.s32.totalorder %s24, 0
      %s27 = sadd.s32 %s26, 1
      %s28 = scalar_select %p25, %s26, %s27
      %p31 = pneg %p25
      %p32 = scmp.eq.s32.totalorder %s16, 1
      %p33 = por %p31, %p32
      %p34 = scmp.ne.s32.totalorder %s26, %s29
      %p35 = scmp.eq.s32.totalorder %s16, 0
      %p36 = por %p34, %p35
      %p37 = scmp.ne.s32.totalorder %s26, %s29
      %p38 = scmp.eq.s32.totalorder %s21, 1
      %p39 = por %p37, %p38
      %p40 = scmp.ne.s32.totalorder %s29, %s30
      %p41 = scmp.eq.s32.totalorder %s21, 0
      %p42 = por %p40, %p41
      %p43 = scmp.ne.s32.totalorder %s29, %s30
      %p44 = scmp.eq.s32.totalorder %s22, 1
      %p45 = por %p43, %p44
      %p47 = scmp.ne.s32.totalorder %s30, %s46
      %p48 = scmp.eq.s32.totalorder %s22, 0
      %p49 = por %p47, %p48
      %s51 = sadd.s32 %s50, 1
      %p54 = scmp.eq.s32.totalorder %s16, 1
      %p55 = scmp.ne.s32.totalorder %s50, %s52
      %p56 = scmp.eq.s32.totalorder %s16, 0
      %p57 = por %p55, %p56
      %p58 = scmp.ne.s32.totalorder %s50, %s52
      %p59 = scmp.eq.s32.totalorder %s21, 1
      %p60 = por %p58, %p59
      %p61 = scmp.ne.s32.totalorder %s52, %s53
      %p62 = scmp.eq.s32.totalorder %s21, 0
      %p63 = por %p61, %p62
      %p64 = scmp.ne.s32.totalorder %s52, %s53
      %p65 = scmp.eq.s32.totalorder %s22, 1
      %p66 = por %p64, %p65
      %p68 = scmp.ne.s32.totalorder %s53, %s67
      %p69 = scmp.eq.s32.totalorder %s22, 0
      %p70 = por %p68, %p69
      %s72 = sadd.s32 %s71, 1
      %p75 = scmp.eq.s32.totalorder %s16, 1
      %p76 = scmp.ne.s32.totalorder %s71, %s73
      %p77 = scmp.eq.s32.totalorder %s16, 0
      %p78 = por %p76, %p77
      %p79 = scmp.ne.s32.totalorder %s71, %s73
      %p80 = scmp.eq.s32.totalorder %s21, 1
      %p81 = por %p79, %p80
      %p82 = scmp.ne.s32.totalorder %s73, %s74
      %p83 = scmp.eq.s32.totalorder %s21, 0
      %p84 = por %p82, %p83
      %p85 = scmp.ne.s32.totalorder %s73, %s74
      %p86 = scmp.eq.s32.totalorder %s22, 1
      %p87 = por %p85, %p86
      %p89 = scmp.ne.s32.totalorder %s74, %s88
      %p90 = scmp.eq.s32.totalorder %s22, 0
      %p91 = por %p89, %p90
      %s93 = sadd.s32 %s92, 1
      %p96 = scmp.eq.s32.totalorder %s16, 1
      %p97 = scmp.ne.s32.totalorder %s92, %s94
      %p98 = scmp.eq.s32.totalorder %s16, 0
      %p99 = por %p97, %p98
      %p100 = scmp.ne.s32.totalorder %s92, %s94
      %p101 = scmp.eq.s32.totalorder %s21, 1
      %p102 = por %p100, %p101
      %p103 = scmp.ne.s32.totalorder %s94, %s95
      %p104 = scmp.eq.s32.totalorder %s21, 0
      %p105 = por %p103, %p104
      %p106 = scmp.ne.s32.totalorder %s94, %s95
      %p107 = scmp.eq.s32.totalorder %s22, 1
      %p108 = por %p106, %p107
      %p110 = scmp.ne.s32.totalorder %s95, %s109
      %p111 = scmp.eq.s32.totalorder %s22, 0
      %p112 = por %p110, %p111
      %s114 = sadd.s32 %s113, 1
      %p117 = scmp.eq.s32.totalorder %s16, 1
      %p118 = scmp.ne.s32.totalorder %s113, %s115
      %p119 = scmp.eq.s32.totalorder %s16, 0
      %p120 = por %p118, %p119
      %p121 = scmp.ne.s32.totalorder %s113, %s115
      %p122 = scmp.eq.s32.totalorder %s21, 1
      %p123 = por %p121, %p122
      %p124 = scmp.ne.s32.totalorder %s115, %s116
      %p125 = scmp.eq.s32.totalorder %s21, 0
      %p126 = por %p124, %p125
      %p127 = scmp.ne.s32.totalorder %s115, %s116
      %p128 = scmp.eq.s32.totalorder %s22, 1
      %p129 = por %p127, %p128
      %p131 = scmp.ne.s32.totalorder %s116, %s130
      %p132 = scmp.eq.s32.totalorder %s22, 0
      %p133 = por %p131, %p132
      %s135 = sadd.s32 %s134, 1
      %p138 = scmp.eq.s32.totalorder %s16, 1
      %p139 = scmp.ne.s32.totalorder %s134, %s136
      %p140 = scmp.eq.s32.totalorder %s16, 0
      %p141 = por %p139, %p140
      %p142 = scmp.ne.s32.totalorder %s134, %s136
      %p143 = scmp.eq.s32.totalorder %s21, 1
      %p144 = por %p142, %p143
      %p145 = scmp.ne.s32.totalorder %s136, %s137
      %p146 = scmp.eq.s32.totalorder %s21, 0
      %p147 = por %p145, %p146
      %p148 = scmp.ne.s32.totalorder %s136, %s137
      %p149 = scmp.eq.s32.totalorder %s22, 1
      %p150 = por %p148, %p149
      %p152 = scmp.ne.s32.totalorder %s137, %s151
      %p153 = scmp.eq.s32.totalorder %s22, 0
      %p154 = por %p152, %p153
      %s156 = sadd.s32 %s155, 1
      %p159 = scmp.eq.s32.totalorder %s16, 1
      %p160 = scmp.ne.s32.totalorder %s155, %s157
      %p161 = scmp.eq.s32.totalorder %s16, 0
      %p162 = por %p160, %p161
      %p163 = scmp.ne.s32.totalorder %s155, %s157
      %p164 = scmp.eq.s32.totalorder %s21, 1
      %p165 = por %p163, %p164
      %p166 = scmp.ne.s32.totalorder %s157, %s158
      %p167 = scmp.eq.s32.totalorder %s21, 0
      %p168 = por %p166, %p167
      %p169 = scmp.ne.s32.totalorder %s157, %s158
      %p170 = scmp.eq.s32.totalorder %s22, 1
      %p171 = por %p169, %p170
      %p173 = scmp.ne.s32.totalorder %s158, %s172
      %p174 = scmp.eq.s32.totalorder %s22, 0
      %p175 = por %p173, %p174
      %s176 = ssub.s32 %s16, %s23
      %p177 = scmp.eq.s32.totalorder %s176, 0
      %s179 = sadd.s32 %s178, 1
      %s180 = scalar_select %p177, %s178, %s179
      %p183 = pneg %p177
      %p184 = scmp.eq.s32.totalorder %s16, 1
      %p185 = por %p183, %p184
      %p186 = scmp.ne.s32.totalorder %s178, %s181
      %p187 = scmp.eq.s32.totalorder %s16, 0
      %p188 = por %p186, %p187
      %p189 = scmp.ne.s32.totalorder %s178, %s181
      %p190 = scmp.eq.s32.totalorder %s21, 1
      %p191 = por %p189, %p190
      %p192 = scmp.ne.s32.totalorder %s181, %s182
      %p193 = scmp.eq.s32.totalorder %s21, 0
      %p194 = por %p192, %p193
      %p195 = scmp.ne.s32.totalorder %s181, %s182
      %p196 = scmp.eq.s32.totalorder %s22, 1
      %p197 = por %p195, %p196
      %p199 = scmp.ne.s32.totalorder %s182, %s198
      %p200 = scmp.eq.s32.totalorder %s22, 0
      %p201 = por %p199, %p200
      %p202 = scmp.le.s32.totalorder 1, %s16
      %p203 = scmp.lt.s32.totalorder %s16, 3
      %p204 = pnand %p202, %p203
      %p205 = pneg %p204
      // Predicated region
      $region9: #{tpu_custom_call.1} parent=5 // pred_check
        _
      $region10: #{tpu_custom_call.1} parent=5 // pred_check_branch
        %207 = sbr.rel (%p204) target = $region12
      $region11: #{tpu_custom_call.1} parent=5 // pred_region
        %s208 = ssub.s32 %s16, 1
        // Predicated region
        $region13: #{tpu_custom_call.1} parent=11 // pred_check
          %p209 = pneg %p63
        $region14: #{tpu_custom_call.1} parent=11 // pred_check_branch
          %211 = sbr.rel (%p209) target = $region16
        $region15: #{tpu_custom_call.1} parent=11 // pred_region
          _
        $region16: #{tpu_custom_call.1} parent=11 // pred_fallthru
          _
        // Predicated region
        $region17: #{tpu_custom_call.1} parent=11 // pred_check
          %p212 = pneg %p84
        $region18: #{tpu_custom_call.1} parent=11 // pred_check_branch
          %214 = sbr.rel (%p212) target = $region20
        $region19: #{tpu_custom_call.1} parent=11 // pred_region
          _
        $region20: #{tpu_custom_call.1} parent=11 // pred_fallthru
          _
        // Predicated region
        $region21: #{tpu_custom_call.1} parent=11 // pred_check
          %p215 = pneg %p105
        $region22: #{tpu_custom_call.1} parent=11 // pred_check_branch
          %217 = sbr.rel (%p215) target = $region24
        $region23: #{tpu_custom_call.1} parent=11 // pred_region
          _
        $region24: #{tpu_custom_call.1} parent=11 // pred_fallthru
          _
        // Predicated region
        $region25: #{tpu_custom_call.1} parent=11 // pred_check
          %p218 = pneg %p126
        $region26: #{tpu_custom_call.1} parent=11 // pred_check_branch
          %220 = sbr.rel (%p218) target = $region28
        $region27: #{tpu_custom_call.1} parent=11 // pred_region
          _
        $region28: #{tpu_custom_call.1} parent=11 // pred_fallthru
          _
        // Predicated region
        $region29: #{tpu_custom_call.1} parent=11 // pred_check
          %p221 = pneg %p147
        $region30: #{tpu_custom_call.1} parent=11 // pred_check_branch
          %223 = sbr.rel (%p221) target = $region32
        $region31: #{tpu_custom_call.1} parent=11 // pred_region
          _
        $region32: #{tpu_custom_call.1} parent=11 // pred_fallthru
          _
        // Predicated region
        $region33: #{tpu_custom_call.1} parent=11 // pred_check
          %p224 = pneg %p168
        $region34: #{tpu_custom_call.1} parent=11 // pred_check_branch
          %226 = sbr.rel (%p224) target = $region36
        $region35: #{tpu_custom_call.1} parent=11 // pred_region
          _
        $region36: #{tpu_custom_call.1} parent=11 // pred_fallthru
          _
      $region12: #{tpu_custom_call.1} parent=5 // pred_fallthru
        _
      %p227 = scmp.lt.s32.totalorder %s16, 2
      // Predicated region
      $region37: #{tpu_custom_call.1} parent=5 // pred_check
        %p228 = pneg %p227
      $region38: #{tpu_custom_call.1} parent=5 // pred_check_branch
        %230 = sbr.rel (%p228) target = $region40
      $region39: #{tpu_custom_call.1} parent=5 // pred_region
        // Predicated region
        $region41: #{tpu_custom_call.1} parent=39 // pred_check
          %p231 = pneg %p36
        $region42: #{tpu_custom_call.1} parent=39 // pred_check_branch
          %233 = sbr.rel (%p231) target = $region44
        $region43: #{tpu_custom_call.1} parent=39 // pred_region
          %p234 = scmp.lt.s32.totalorder %s16, 1
          %s235 = scalar_select %p234, %s16, 1
          %s236 = smul.addr %s235, 8
          %s237 = scalar_lea.vmem %s0, %s236
        $region44: #{tpu_custom_call.1} parent=39 // pred_fallthru
          _
      $region40: #{tpu_custom_call.1} parent=5 // pred_fallthru
        _
      %p238 = scmp.le.s32.totalorder 1, %s16
      %p239 = scmp.lt.s32.totalorder %s16, 3
      %p240 = pnand %p238, %p239
      %p241 = pneg %p240
      // Predicated region
      $region45: #{tpu_custom_call.1} parent=5 // pred_check
        _
      $region46: #{tpu_custom_call.1} parent=5 // pred_check_branch
        %243 = sbr.rel (%p240) target = $region48
      $region47: #{tpu_custom_call.1} parent=5 // pred_region
        %s244 = ssub.s32 %s16, 1
        %p245 = scmp.lt.s32.totalorder %s21, 1
        %s246 = scalar_select %p245, %s21, 1
        %s247 = smul.addr %s246, 8
        %s248 = scalar_lea.vmem %s0, %s247
        %p249 = pneg %p42
        %p250 = pneg %p39
        %p251 = pneg %p63
        %p252 = pneg %p60
        %p253 = pneg %p84
        %p254 = pneg %p81
        %p255 = pneg %p105
        %p256 = pneg %p102
        %p257 = pneg %p126
        %p258 = pneg %p123
        %p259 = pneg %p147
        %p260 = pneg %p144
        %p261 = pneg %p168
        %p262 = pneg %p165
        %p263 = pneg %p194
        %p264 = pneg %p191
        %s265 = sand.u32 %s181, 1
        %s266 = scalar_lea.sflag [#allocation3], %s265
        %s267 = sand.u32 %s181, 1
        %s268 = smul.addr %s267, 8
        %s269 = scalar_lea.vmem [#allocation2], %s268
        %p270 = scmp.lt.s32.totalorder %s21, 1
        %s271 = scalar_select %p270, %s21, 1
        %s272 = smul.addr %s271, 8
        %s273 = scalar_lea.vmem %s0, %s272
        %v275 = vld [vmem:[%s273] sm:$0xff]
        %v276 = vpack.c.bf16 %v275, %v275
        %v277 = vld [vmem:[%s1] sm:$0xf]
        %v278 = vld [vmem:[%s1 + $0x4] sm:$0xf]
        %v279 = vld [vmem:[%s1 + $0x8] sm:$0xf]
        %v280 = vld [vmem:[%s1 + $0xc] sm:$0xf]
        %v281 = vld [vmem:[%s1 + $0x10] sm:$0xf]
        %v282 = vld [vmem:[%s1 + $0x14] sm:$0xf]
        %v283 = vld [vmem:[%s1 + $0x18] sm:$0xf]
        %v284 = vld [vmem:[%s1 + $0x1c] sm:$0xf]
        %v285 = vld [vmem:[%s1 + $0x20] sm:$0xf]
        %v286 = vld [vmem:[%s1 + $0x24] sm:$0xf]
        %v287 = vld [vmem:[%s1 + $0x28] sm:$0xf]
        %v288 = vld [vmem:[%s1 + $0x2c] sm:$0xf]
        %v289 = vld [vmem:[%s1 + $0x30] sm:$0xf]
        %v290 = vld [vmem:[%s1 + $0x34] sm:$0xf]
        %v291 = vld [vmem:[%s1 + $0x38] sm:$0xf]
        %v292 = vld [vmem:[%s1 + $0x3c] sm:$0xf]
        %v293 = vld [vmem:[%s2] sm:$0x1]
        %v295 = vlaneseq
        %v296 = vshrl.u32 %v295, 7
        %v297 = vsub.s32 0, %v296
        %v298 = vrot.slane %v293, %v297
        %v316 = vunpack.c.l.b16 %v277
        %v317 = vunpack.c.l.b16 %v278
        %v318 = vunpack.c.l.b16 %v279
        %v319 = vunpack.c.l.b16 %v280
        %v320 = vunpack.c.l.b16 %v281
        %v321 = vunpack.c.l.b16 %v282
        %v322 = vunpack.c.l.b16 %v283
        %v323 = vunpack.c.l.b16 %v284
        %v324 = vunpack.c.l.b16 %v285
        %v325 = vunpack.c.l.b16 %v286
        %v326 = vunpack.c.l.b16 %v287
        %v327 = vunpack.c.l.b16 %v288
        %v328 = vunpack.c.l.b16 %v289
        %v329 = vunpack.c.l.b16 %v290
        %v330 = vunpack.c.l.b16 %v291
        %v331 = vunpack.c.l.b16 %v292
        %v332 = vpack.c.b16 %v317, %v316
        %v333 = vpack.c.b16 %v319, %v318
        %v334 = vpack.c.b16 %v321, %v320
        %v335 = vpack.c.b16 %v323, %v322
        %v336 = vpack.c.b16 %v325, %v324
        %v337 = vpack.c.b16 %v327, %v326
        %v338 = vpack.c.b16 %v329, %v328
        %v339 = vpack.c.b16 %v331, %v330
        %348 = vmatprep.subr.bf16.mxu0 0
        %349 = vmatpush1.bf16.msra.mxu0 %v332
        %350 = vmatprep.subr.bf16.mxu0 0
        %351 = vmatpush1.bf16.msra.mxu0 %v333
        %352 = vmatprep.subr.bf16.mxu0 0
        %353 = vmatpush1.bf16.msra.mxu0 %v334
        %354 = vmatprep.subr.bf16.mxu0 0
        %355 = vmatpush1.bf16.msra.mxu0 %v335
        %356 = vmatprep.subr.bf16.mxu0 0
        %357 = vmatpush1.bf16.msra.mxu0 %v336
        %358 = vmatprep.subr.bf16.mxu0 0
        %359 = vmatpush1.bf16.msra.mxu0 %v337
        %360 = vmatprep.subr.bf16.mxu0 0
        %361 = vmatpush1.bf16.msra.mxu0 %v338
        %362 = vmatprep.subr.bf16.mxu0 0
        %363 = vmatpush1.bf16.msra.mxu0 %v339
        %364 = vmatprep.subr.bf16.mxu0 0
        %365 = vmatpush1.bf16.msra.mxu0 0
        %366 = vmatprep.subr.bf16.mxu0 0
        %367 = vmatpush1.bf16.msra.mxu0 0
        %368 = vmatprep.subr.bf16.mxu0 0
        %369 = vmatpush1.bf16.msra.mxu0 0
        %370 = vmatprep.subr.bf16.mxu0 0
        %371 = vmatpush1.bf16.msra.mxu0 0
        %372 = vmatprep.subr.bf16.mxu0 0
        %373 = vmatpush1.bf16.msra.mxu0 0
        %374 = vmatprep.subr.bf16.mxu0 0
        %375 = vmatpush1.bf16.msra.mxu0 0
        %376 = vmatprep.subr.bf16.mxu0 0
        %377 = vmatpush1.bf16.msra.mxu0 0
        %378 = vmatprep.subr.bf16.mxu0 0
        %379 = vmatpush1.bf16.msra.mxu0 0
        %380 = vmatprep.mubr.bf16.mxu0 0
        %381 = vmatmul.mubr.bf16.gmra.mrb[0].mxu0 %v276
        %v382 = vpop.f32.mrb[0].mxu0
        %v383 = vadd.f32 %v298, %v382
        %v384 = vpop.f32.mrb[0].mxu0
        %v385 = vpop.f32.mrb[0].mxu0
        %v386 = vpop.f32.mrb[0].mxu0
        %387 = vdwg.mxu0
        %v388 = vmax.f32 %v383, 0.0
        %v389 = vlaneseq
        %v390 = vshrl.u32 %v389, 7
        %vm391 = vcmp.lt.s32.totalorder %v390, 0
        %v392 = vsub.s32 0, %v390
        %v393 = vsel %vm391, %v392, %v390
        %v394 = vshrl.u32 %v393, 3
        %v395 = vand.u32 %v393, 7
        %v396 = vsub.s32 0, %v395
        %v397 = vsel %vm391, %v396, %v395
        %vm398 = vcmp.ne.s32.totalorder %v397, 0
        %vm399 = vcmp.lt.s32.totalorder %v397, 0
        %vm400 = vmand %vm399, %vm398
        %v401 = vadd.s32 %v397, 8
        %v402 = vsel %vm400, %v401, %v397
        %vm403 = vcmp.gt.s32.totalorder %v402, 0
        %v404 = vrot.slane %v388, 7
        %v405 = vsel %vm403, 1, 0
        %vm406 = vcmp.eq.s32.totalorder %v405, 1
        %v407 = vsel %vm406, %v404, 0.0
        %vm408 = vcmp.lt.s32.totalorder %v402, 7
        %v409 = vrot.slane %v388, 1
        %v410 = vsel %vm408, 1, 0
        %vm411 = vcmp.eq.s32.totalorder %v410, 1
        %v412 = vsel %vm411, %v409, 0.0
        %v413 = vpack.c.bf16 %v407, %v407
        %v414 = vld [vmem:[%s3] sm:$0xf]
        %v415 = vld [vmem:[%s3 + $0x4] sm:$0xf]
        %v416 = vld [vmem:[%s3 + $0x8] sm:$0xf]
        %v417 = vld [vmem:[%s3 + $0xc] sm:$0xf]
        %v418 = vpack.c.bf16 %v388, %v388
        %s419 = scalar_lea.vmem %s3, 16
        %v420 = vld [vmem:[%s419] sm:$0xf]
        %v421 = vld [vmem:[%s419 + $0x4] sm:$0xf]
        %v422 = vld [vmem:[%s419 + $0x8] sm:$0xf]
        %v423 = vld [vmem:[%s419 + $0xc] sm:$0xf]
        %v428 = vunpack.c.l.b16 %v420
        %v429 = vunpack.c.l.b16 %v421
        %v430 = vunpack.c.l.b16 %v422
        %v431 = vunpack.c.l.b16 %v423
        %v432 = vpack.c.b16 %v429, %v428
        %v433 = vpack.c.b16 %v431, %v430
        %vm436 = vcmask 261120
        %v438 = vsel %vm436, %v418, 0
        %440 = vmatprep.subr.bf16.mxu0 0
        %441 = vmatpush1.bf16.msra.mxu0 %v432
        %442 = vmatprep.subr.bf16.mxu0 0
        %443 = vmatpush1.bf16.msra.mxu0 %v433
        %444 = vmatprep.subr.bf16.mxu0 0
        %445 = vmatpush1.bf16.msra.mxu0 0
        %446 = vmatprep.subr.bf16.mxu0 0
        %447 = vmatpush1.bf16.msra.mxu0 0
        %448 = vmatprep.subr.bf16.mxu0 0
        %449 = vmatpush1.bf16.msra.mxu0 0
        %450 = vmatprep.subr.bf16.mxu0 0
        %451 = vmatpush1.bf16.msra.mxu0 0
        %452 = vmatprep.subr.bf16.mxu0 0
        %453 = vmatpush1.bf16.msra.mxu0 0
        %454 = vmatprep.subr.bf16.mxu0 0
        %455 = vmatpush1.bf16.msra.mxu0 0
        %456 = vmatprep.subr.bf16.mxu0 0
        %457 = vmatpush1.bf16.msra.mxu0 0
        %458 = vmatprep.subr.bf16.mxu0 0
        %459 = vmatpush1.bf16.msra.mxu0 0
        %460 = vmatprep.subr.bf16.mxu0 0
        %461 = vmatpush1.bf16.msra.mxu0 0
        %462 = vmatprep.subr.bf16.mxu0 0
        %463 = vmatpush1.bf16.msra.mxu0 0
        %464 = vmatprep.subr.bf16.mxu0 0
        %465 = vmatpush1.bf16.msra.mxu0 0
        %466 = vmatprep.subr.bf16.mxu0 0
        %467 = vmatpush1.bf16.msra.mxu0 0
        %468 = vmatprep.subr.bf16.mxu0 0
        %469 = vmatpush1.bf16.msra.mxu0 0
        %470 = vmatprep.subr.bf16.mxu0 0
        %471 = vmatpush1.bf16.msra.mxu0 0
        %472 = vmatprep.mubr.bf16.mxu0 0
        %473 = vmatmul.mubr.bf16.gmra.mrb[0].mxu0 %v438
        %v474 = vpop.f32.mrb[0].mxu0
        %v475 = vadd.f32 0.0, %v474
        %v476 = vpop.f32.mrb[0].mxu0
        %v477 = vpop.f32.mrb[0].mxu0
        %v478 = vpop.f32.mrb[0].mxu0
        %479 = vdwg.mxu0
        %v484 = vunpack.c.l.b16 %v414
        %v485 = vunpack.c.l.b16 %v415
        %v486 = vunpack.c.l.b16 %v416
        %v487 = vunpack.c.l.b16 %v417
        %v488 = vpack.c.b16 %v485, %v484
        %v489 = vpack.c.b16 %v487, %v486
        %v493 = vsel %vm436, %v413, 0
        %495 = vmatprep.subr.bf16.mxu0 0
        %496 = vmatpush1.bf16.msra.mxu0 %v488
        %497 = vmatprep.subr.bf16.mxu0 0
        %498 = vmatpush1.bf16.msra.mxu0 %v489
        %499 = vmatprep.subr.bf16.mxu0 0
        %500 = vmatpush1.bf16.msra.mxu0 0
        %501 = vmatprep.subr.bf16.mxu0 0
        %502 = vmatpush1.bf16.msra.mxu0 0
        %503 = vmatprep.subr.bf16.mxu0 0
        %504 = vmatpush1.bf16.msra.mxu0 0
        %505 = vmatprep.subr.bf16.mxu0 0
        %506 = vmatpush1.bf16.msra.mxu0 0
        %507 = vmatprep.subr.bf16.mxu0 0
        %508 = vmatpush1.bf16.msra.mxu0 0
        %509 = vmatprep.subr.bf16.mxu0 0
        %510 = vmatpush1.bf16.msra.mxu0 0
        %511 = vmatprep.subr.bf16.mxu0 0
        %512 = vmatpush1.bf16.msra.mxu0 0
        %513 = vmatprep.subr.bf16.mxu0 0
        %514 = vmatpush1.bf16.msra.mxu0 0
        %515 = vmatprep.subr.bf16.mxu0 0
        %516 = vmatpush1.bf16.msra.mxu0 0
        %517 = vmatprep.subr.bf16.mxu0 0
        %518 = vmatpush1.bf16.msra.mxu0 0
        %519 = vmatprep.subr.bf16.mxu0 0
        %520 = vmatpush1.bf16.msra.mxu0 0
        %521 = vmatprep.subr.bf16.mxu0 0
        %522 = vmatpush1.bf16.msra.mxu0 0
        %523 = vmatprep.subr.bf16.mxu0 0
        %524 = vmatpush1.bf16.msra.mxu0 0
        %525 = vmatprep.subr.bf16.mxu0 0
        %526 = vmatpush1.bf16.msra.mxu0 0
        %527 = vmatprep.mubr.bf16.mxu0 0
        %528 = vmatmul.mubr.bf16.gmra.mrb[0].mxu0 %v493
        %v529 = vpop.f32.mrb[0].mxu0
        %v530 = vadd.f32 %v475, %v529
        %v531 = vpop.f32.mrb[0].mxu0
        %v532 = vpop.f32.mrb[0].mxu0
        %v533 = vpop.f32.mrb[0].mxu0
        %534 = vdwg.mxu0
        %v535 = vpack.c.bf16 %v412, %v412
        %s536 = scalar_lea.vmem %s3, 32
        %v537 = vld [vmem:[%s536] sm:$0xf]
        %v538 = vld [vmem:[%s536 + $0x4] sm:$0xf]
        %v539 = vld [vmem:[%s536 + $0x8] sm:$0xf]
        %v540 = vld [vmem:[%s536 + $0xc] sm:$0xf]
        %v545 = vunpack.c.l.b16 %v537
        %v546 = vunpack.c.l.b16 %v538
        %v547 = vunpack.c.l.b16 %v539
        %v548 = vunpack.c.l.b16 %v540
        %v549 = vpack.c.b16 %v546, %v545
        %v550 = vpack.c.b16 %v548, %v547
        %v554 = vsel %vm436, %v535, 0
        %556 = vmatprep.subr.bf16.mxu0 0
        %557 = vmatpush1.bf16.msra.mxu0 %v549
        %558 = vmatprep.subr.bf16.mxu0 0
        %559 = vmatpush1.bf16.msra.mxu0 %v550
        %560 = vmatprep.subr.bf16.mxu0 0
        %561 = vmatpush1.bf16.msra.mxu0 0
        %562 = vmatprep.subr.bf16.mxu0 0
        %563 = vmatpush1.bf16.msra.mxu0 0
        %564 = vmatprep.subr.bf16.mxu0 0
        %565 = vmatpush1.bf16.msra.mxu0 0
        %566 = vmatprep.subr.bf16.mxu0 0
        %567 = vmatpush1.bf16.msra.mxu0 0
        %568 = vmatprep.subr.bf16.mxu0 0
        %569 = vmatpush1.bf16.msra.mxu0 0
        %570 = vmatprep.subr.bf16.mxu0 0
        %571 = vmatpush1.bf16.msra.mxu0 0
        %572 = vmatprep.subr.bf16.mxu0 0
        %573 = vmatpush1.bf16.msra.mxu0 0
        %574 = vmatprep.subr.bf16.mxu0 0
        %575 = vmatpush1.bf16.msra.mxu0 0
        %576 = vmatprep.subr.bf16.mxu0 0
        %577 = vmatpush1.bf16.msra.mxu0 0
        %578 = vmatprep.subr.bf16.mxu0 0
        %579 = vmatpush1.bf16.msra.mxu0 0
        %580 = vmatprep.subr.bf16.mxu0 0
        %581 = vmatpush1.bf16.msra.mxu0 0
        %582 = vmatprep.subr.bf16.mxu0 0
        %583 = vmatpush1.bf16.msra.mxu0 0
        %584 = vmatprep.subr.bf16.mxu0 0
        %585 = vmatpush1.bf16.msra.mxu0 0
        %586 = vmatprep.subr.bf16.mxu0 0
        %587 = vmatpush1.bf16.msra.mxu0 0
        %588 = vmatprep.mubr.bf16.mxu0 0
        %589 = vmatmul.mubr.bf16.gmra.mrb[0].mxu0 %v554
        %v590 = vpop.f32.mrb[0].mxu0
        %v591 = vadd.f32 0.0, %v590
        %v592 = vpop.f32.mrb[0].mxu0
        %v593 = vpop.f32.mrb[0].mxu0
        %v594 = vpop.f32.mrb[0].mxu0
        %595 = vdwg.mxu0
        %v596 = vadd.f32 %v530, %v591
        %v597 = vld [vmem:[%s4] sm:$0x1]
        %v599 = vlaneseq
        %v600 = vshrl.u32 %v599, 7
        %v601 = vsub.s32 0, %v600
        %v602 = vrot.slane %v597, %v601
        %v604 = vadd.f32 %v596, %v602
        %v605 = vmax.f32 %v604, 0.0
        %v606 = vpack.c.bf16 %v605, %v605
        %v607 = vld [vmem:[%s5] sm:$0xf]
        %v608 = vld [vmem:[%s5 + $0x4] sm:$0xf]
        %v609 = vld [vmem:[%s5 + $0x8] sm:$0xf]
        %v610 = vld [vmem:[%s5 + $0xc] sm:$0xf]
        %v611 = vld [vmem:[%s6] sm:$0x1]
        %v613 = vlaneseq
        %v614 = vshrl.u32 %v613, 7
        %v615 = vsub.s32 0, %v614
        %v616 = vrot.slane %v611, %v615
        %v622 = vunpack.c.l.b16 %v607
        %v623 = vunpack.c.l.b16 %v608
        %v624 = vunpack.c.l.b16 %v609
        %v625 = vunpack.c.l.b16 %v610
        %v626 = vpack.c.b16 %v623, %v622
        %v627 = vpack.c.b16 %v625, %v624
        %v631 = vsel %vm436, %v606, 0
        %633 = vmatprep.subr.bf16.mxu0 0
        %634 = vmatpush1.bf16.msra.mxu0 %v626
        %635 = vmatprep.subr.bf16.mxu0 0
        %636 = vmatpush1.bf16.msra.mxu0 %v627
        %637 = vmatprep.subr.bf16.mxu0 0
        %638 = vmatpush1.bf16.msra.mxu0 0
        %639 = vmatprep.subr.bf16.mxu0 0
        %640 = vmatpush1.bf16.msra.mxu0 0
        %641 = vmatprep.subr.bf16.mxu0 0
        %642 = vmatpush1.bf16.msra.mxu0 0
        %643 = vmatprep.subr.bf16.mxu0 0
        %644 = vmatpush1.bf16.msra.mxu0 0
        %645 = vmatprep.subr.bf16.mxu0 0
        %646 = vmatpush1.bf16.msra.mxu0 0
        %647 = vmatprep.subr.bf16.mxu0 0
        %648 = vmatpush1.bf16.msra.mxu0 0
        %649 = vmatprep.subr.bf16.mxu0 0
        %650 = vmatpush1.bf16.msra.mxu0 0
        %651 = vmatprep.subr.bf16.mxu0 0
        %652 = vmatpush1.bf16.msra.mxu0 0
        %653 = vmatprep.subr.bf16.mxu0 0
        %654 = vmatpush1.bf16.msra.mxu0 0
        %655 = vmatprep.subr.bf16.mxu0 0
        %656 = vmatpush1.bf16.msra.mxu0 0
        %657 = vmatprep.subr.bf16.mxu0 0
        %658 = vmatpush1.bf16.msra.mxu0 0
        %659 = vmatprep.subr.bf16.mxu0 0
        %660 = vmatpush1.bf16.msra.mxu0 0
        %661 = vmatprep.subr.bf16.mxu0 0
        %662 = vmatpush1.bf16.msra.mxu0 0
        %663 = vmatprep.subr.bf16.mxu0 0
        %664 = vmatpush1.bf16.msra.mxu0 0
        %665 = vmatprep.mubr.bf16.mxu0 0
        %666 = vmatmul.mubr.bf16.gmra.mrb[0].mxu0 %v631
        %v667 = vpop.f32.mrb[0].mxu0
        %v668 = vadd.f32 %v616, %v667
        %v669 = vpop.f32.mrb[0].mxu0
        %v670 = vpop.f32.mrb[0].mxu0
        %v671 = vpop.f32.mrb[0].mxu0
        %672 = vdwg.mxu0
        %v673 = vadd.f32 %v668, %v275
        %v674 = vmax.f32 %v673, 0.0
        %675 = vst [vmem:[%s269] sm:$0xff] %v674
        %s676 = sand.u32 %s181, 1
        %s677 = scalar_lea.sflag [#allocation3], %s676
        %s678 = sand.u32 %s181, 1
        %s679 = smul.addr %s678, 8
        %s680 = scalar_lea.vmem [#allocation2], %s679
        // Predicated region
        $region49: #{tpu_custom_call.1} parent=47 // pred_check
          %p681 = pneg %p191
        $region50: #{tpu_custom_call.1} parent=47 // pred_check_branch
          %683 = sbr.rel (%p681) target = $region52
        $region51: #{tpu_custom_call.1} parent=47 // pred_region
          %s685 = ssub.s32 128, 128
          %686 = vsyncadd %s677, %s685
          %s687 = smul.addr %s21, 128
          %s688 = scalar_lea.hbm %s7, %s687
          %s690 = sshll.u32 %s680, 4
          %s691 = int_to_ptr.vmem [resolvable:$true] %s690
          %693 = dma.vmem_to_hbm [thread:$0]  %s691, 128, %s688, %s677
        $region52: #{tpu_custom_call.1} parent=47 // pred_fallthru
          _
      $region48: #{tpu_custom_call.1} parent=5 // pred_fallthru
        _
      %p694 = scmp.le.s32.totalorder 2, %s16
      // Predicated region
      $region53: #{tpu_custom_call.1} parent=5 // pred_check
        %p695 = pneg %p694
      $region54: #{tpu_custom_call.1} parent=5 // pred_check_branch
        %697 = sbr.rel (%p695) target = $region56
      $region55: #{tpu_custom_call.1} parent=5 // pred_region
        %s698 = ssub.s32 %s16, 2
        // Predicated region
        $region57: #{tpu_custom_call.1} parent=55 // pred_check
          %p699 = pneg %p197
        $region58: #{tpu_custom_call.1} parent=55 // pred_check_branch
          %701 = sbr.rel (%p699) target = $region60
        $region59: #{tpu_custom_call.1} parent=55 // pred_region
          %s702 = sand.u32 %s182, 1
          %s703 = scalar_lea.sflag [#allocation3], %s702
          %s704 = sand.u32 %s182, 1
          %s705 = smul.addr %s704, 8
          %s706 = scalar_lea.vmem [#allocation2], %s705
          %707 = dma.done %s703, 128
        $region60: #{tpu_custom_call.1} parent=55 // pred_fallthru
          _
      $region56: #{tpu_custom_call.1} parent=5 // pred_fallthru
        _
    $region6: #{tpu_custom_call.1} parent=1 // loop_footer
      %s20 = sadd.s32 1, %s16
    $region7: #{tpu_custom_call.1} parent=1 // loop_footer_branch
      %15 = sbr.rel target = $region3
    $region8: #{tpu_custom_call.1} parent=1 // loop_exit
      _
    %708 = vsyncpa [#allocation3], 1
    %s709 = scalar_lea.sflag [#allocation3], 1
    %710 = vsyncpa %s709, 1

</llo_original>
